<compile_context>
chip_gen: v7x
topology: tpu7x:2x2x1
jax: 0.10.0
libtpu: 0.0.40
codegen_flags: <defaults>
</compile_context>

<pallas_src>
import functools

import jax
import jax.numpy as jnp
from jax import lax
from jax.experimental import pallas as pl
from jax.experimental.pallas import tpu as pltpu

LANES = 128
MAX_BLOCK_ROWS = 2048                 # 2048 x 128 f32 = 1 MiB / input / step
VMEM_LIMIT_BYTES = 32 * 1024 * 1024   # fits 2x double-buffered f32 + int8 mask


def _sublane_quantum(dtype):
    """Native sublane tiling for a dtype: f32 -> 8, bf16 -> 16, int8 -> 32."""
    return max(8, 32 // jnp.dtype(dtype).itemsize)


def _valid_and_diff(pred_ref, gt_ref, mask_ref, *, rows, block_rows,
                    ignore_index, ragged_grid):
    pred = pred_ref[...].astype(jnp.float32)
    gt = gt_ref[...].astype(jnp.float32)
    valid = gt != ignore_index
    if mask_ref is not None:
        valid = valid & (mask_ref[...] != 0)
    if ragged_grid:
        # Only needed when the last tile sticks out past the (padded) array;
        # the sub-row tail is already killed by the gt == ignore_index sentinel.
        t = pl.program_id(0)
        rid = lax.broadcasted_iota(jnp.int32, (block_rows, LANES), 0)
        valid = valid & ((rid + t * block_rows) < rows)
    return valid, jnp.abs(pred - gt)


def _max_kernel(*refs, rows, block_rows, ignore_index, has_mask, ragged_grid):
    if has_mask:
        pred_ref, gt_ref, mask_ref, max_ref = refs
    else:
        pred_ref, gt_ref, max_ref = refs
        mask_ref = None
    valid, diff = _valid_and_diff(
        pred_ref, gt_ref, mask_ref, rows=rows, block_rows=block_rows,
        ignore_index=ignore_index, ragged_grid=ragged_grid)
    d = jnp.where(valid, diff, -jnp.inf)
    # (block_rows,128) -> (block_rows//8, 8, 128) splits the sublane axis at
    # vreg boundaries; the axis-0 reduction is pure VPU work and only one
    # (8,128) slab is stored per tile.
    max_ref[0] = jnp.max(d.reshape(block_rows // 8, 8, LANES), axis=0)


def _sum_kernel(*refs, rows, block_rows, ignore_index, has_mask, ragged_grid):
    if has_mask:
        c_ref, pred_ref, gt_ref, mask_ref, sum_ref, cnt_ref = refs
    else:
        c_ref, pred_ref, gt_ref, sum_ref, cnt_ref = refs
        mask_ref = None
    c, c2, inv_2c = c_ref[0], c_ref[1], c_ref[2]   # precomputed in the wrapper
    valid, diff = _valid_and_diff(
        pred_ref, gt_ref, mask_ref, rows=rows, block_rows=block_rows,
        ignore_index=ignore_index, ragged_grid=ragged_grid)
    loss = jnp.where(diff <= c, diff, (diff * diff + c2) * inv_2c)
    contrib = jnp.where(valid, loss, 0.0)
    sum_ref[0] = jnp.sum(contrib.reshape(block_rows // 8, 8, LANES), axis=0)
    cnt_ref[0] = jnp.sum(
        valid.astype(jnp.int32).reshape(block_rows // 8, 8, LANES), axis=0)


def berhu_loss(prediction, ground_truth, imagemask=None, ignore_index=1):
    """Pallas implementation of BerhuLoss.forward (returns a scalar f32)."""
    assert prediction.shape == ground_truth.shape
    n = int(prediction.size)
    assert 0 < n < 2**31
    has_mask = imagemask is not None

    inputs = [prediction.reshape(-1), ground_truth.reshape(-1)]
    quantum = max(_sublane_quantum(prediction.dtype),
                  _sublane_quantum(ground_truth.dtype))
    if has_mask:
        # Stream the mask as int8 (1 B/elem); `!= 0` first matches torch's
        # `.to(torch.bool)` semantics (any nonzero value -> True).
        m = (imagemask != 0).astype(jnp.int8)
        if m.shape != prediction.shape:
            # TODO(synk): express the broadcast via the mask's BlockSpec instead
            # of materializing a full-size (1 B/elem) copy in HBM.
            m = jnp.broadcast_to(m, prediction.shape)
        inputs.append(m.reshape(-1))
        quantum = max(quantum, _sublane_quantum(jnp.int8))

    # Pad the ragged tail up to a whole number of (quantum, 128) tiles, with
    # gt = ignore_index as sentinel so padded elements are invalid "for free".
    padded = -(-n // (quantum * LANES)) * (quantum * LANES)
    pad = padded - n
    if pad:
        inputs[0] = jnp.pad(inputs[0], (0, pad))
        inputs[1] = jnp.pad(inputs[1], (0, pad), constant_values=ignore_index)
        if has_mask:
            inputs[2] = jnp.pad(inputs[2], (0, pad))
    rows = padded // LANES
    inputs = [x.reshape(rows, LANES) for x in inputs]

    block_rows = min(rows, MAX_BLOCK_ROWS)        # always a multiple of 8
    num_tiles = -(-rows // block_rows)
    ragged_grid = (rows % block_rows) != 0

    data_spec = pl.BlockSpec((block_rows, LANES), lambda t: (t, 0))
    part_spec = pl.BlockSpec((1, 8, LANES), lambda t: (t, 0, 0))
    smem_spec = pl.BlockSpec(memory_space=pltpu.MemorySpace.SMEM)
    part_shape = (num_tiles, 8, LANES)
    cparams = pltpu.CompilerParams(
        dimension_semantics=("parallel",),
        vmem_limit_bytes=VMEM_LIMIT_BYTES)
    static = dict(rows=rows, block_rows=block_rows,
                  ignore_index=float(ignore_index), has_mask=has_mask,
                  ragged_grid=ragged_grid)

    # Pass 0: per-tile elementwise maxima of |pred - gt| over valid elements.
    maxes = pl.pallas_call(
        functools.partial(_max_kernel, **static),
        out_shape=jax.ShapeDtypeStruct(part_shape, jnp.float32),
        grid=(num_tiles,),
        in_specs=[data_spec] * len(inputs),
        out_specs=part_spec,
        compiler_params=cparams,
    )(*inputs)

    c = 0.2 * jnp.max(maxes)
    c_params = jnp.stack([c, c * c, 0.5 / c]).astype(jnp.float32)

    # Pass 1: per-tile partial sums / exact int32 counts of BerHu contributions.
    sums, cnts = pl.pallas_call(
        functools.partial(_sum_kernel, **static),
        out_shape=(jax.ShapeDtypeStruct(part_shape, jnp.float32),
                   jax.ShapeDtypeStruct(part_shape, jnp.int32)),
        grid=(num_tiles,),
        in_specs=[smem_spec] + [data_spec] * len(inputs),
        out_specs=(part_spec, part_spec),
        compiler_params=cparams,
    )(c_params, *inputs)

    # NOTE: zero valid elements yields NaN (0/0), matching the reference.
    return jnp.sum(sums) / jnp.sum(cnts).astype(jnp.float32)


def berhu_ref(prediction, ground_truth, imagemask=None, ignore_index=1):
    """Pure-JAX reference mirroring the PyTorch module."""
    mask = ground_truth != ignore_index
    if imagemask is not None:
        mask = mask & imagemask.astype(bool)
    diff = jnp.abs(prediction - ground_truth).astype(jnp.float32)
    c = 0.2 * jnp.max(jnp.where(mask, diff, -jnp.inf))
    lin = mask & (diff <= c)
    non_lin = mask & (diff > c)
    total = (jnp.sum(jnp.where(lin, diff, 0.0))
             + jnp.sum(jnp.where(non_lin, (diff * diff + c * c) / (2.0 * c), 0.0)))
    return total / jnp.sum(mask).astype(jnp.float32)


if __name__ == "__main__":
    key = jax.random.PRNGKey(0)
    k1, k2, k3 = jax.random.split(key, 3)

    B, C, H, W = 2, 4, 16, 16
    prediction = jax.random.normal(k1, (B, C, H, W), jnp.float32) * 2.0
    ground_truth = jax.random.normal(k2, (B, C, H, W), jnp.float32) * 2.0
    # Exercise the ignore_index path: set some GT pixels to exactly 1.
    ground_truth = ground_truth.at[0, 0, :4, :4].set(1.0)
    # Optional imagemask with some zeros.
    imagemask = (jax.random.uniform(k3, (B, C, H, W)) > 0.1).astype(jnp.int32)

    # No-mask case (kernel variant without a mask stream).
    loss_a = berhu_loss(prediction, ground_truth)
    ref_a = berhu_ref(prediction, ground_truth)
    # With imagemask (streamed as int8).
    loss_b = berhu_loss(prediction, ground_truth, imagemask)
    ref_b = berhu_ref(prediction, ground_truth, imagemask)

    jax.block_until_ready((loss_a, loss_b))

    assert jnp.allclose(loss_a, ref_a, rtol=1e-5, atol=1e-5), (loss_a, ref_a)
    assert jnp.allclose(loss_b, ref_b, rtol=1e-5, atol=1e-5), (loss_b, ref_b)
    print("KERNEL_OK")
</pallas_src>

<mosaic_0001>
module attributes {stable_mosaic.version = 11 : i64} {
  func.func @_max_kernel(%arg0: i32, %arg1: memref<16x128xf32, #tpu.memory_space<vmem>>, %arg2: memref<16x128xf32, #tpu.memory_space<vmem>>, %arg3: memref<1x8x128xf32, #tpu.memory_space<vmem>>) attributes {dimension_semantics = [#tpu.dimension_semantics<parallel>], iteration_bounds = array<i64: 1>, scalar_prefetch = 0 : i64, scratch_operands = 0 : i64, tpu.core_type = #tpu.core_type<tc>, window_params = [{transform_indices = @transform_0, window_bounds = array<i64: 16, 128>}, {transform_indices = @transform_1, window_bounds = array<i64: 16, 128>}, {transform_indices = @transform_2, window_bounds = array<i64: 1, 8, 128>}]} {
    %c0 = arith.constant 0 : index
    %c0_0 = arith.constant 0 : index
    %0 = vector.load %arg1[%c0, %c0_0] : memref<16x128xf32, #tpu.memory_space<vmem>>, vector<16x128xf32>
    %c0_1 = arith.constant 0 : index
    %c0_2 = arith.constant 0 : index
    %1 = vector.load %arg2[%c0_1, %c0_2] : memref<16x128xf32, #tpu.memory_space<vmem>>, vector<16x128xf32>
    %cst = arith.constant 1.000000e+00 : f32
    %2 = vector.broadcast %cst : f32 to vector<16x128xf32>
    %3 = arith.cmpf one, %1, %2 : vector<16x128xf32>
    %4 = arith.subf %0, %1 : vector<16x128xf32>
    %5 = math.absf %4 : vector<16x128xf32>
    %cst_3 = arith.constant 0xFF800000 : f32
    %6 = vector.broadcast %cst_3 : f32 to vector<16x128xf32>
    %7 = arith.select %3, %5, %6 : vector<16x128xi1>, vector<16x128xf32>
    %8 = vector.shape_cast %7 : vector<16x128xf32> to vector<2x8x128xf32>
    %cst_4 = arith.constant dense<0xFF800000> : vector<8x128xf32>
    %9 = vector.multi_reduction <maximumf>, %8, %cst_4 [0] : vector<2x8x128xf32> to vector<8x128xf32>
    %c0_5 = arith.constant 0 : index
    %c0_6 = arith.constant 0 : index
    %c0_7 = arith.constant 0 : index
    %10 = vector.load %arg3[%c0_5, %c0_6, %c0_7] : memref<1x8x128xf32, #tpu.memory_space<vmem>>, vector<1x8x128xf32>
    %11 = vector.shape_cast %10 : vector<1x8x128xf32> to vector<8x128xf32>
    %12 = vector.shape_cast %9 : vector<8x128xf32> to vector<1x8x128xf32>
    tpu.vector_store %arg3[%c0_5, %c0_6, %c0_7], %12 {strides = array<i32>} : memref<1x8x128xf32, #tpu.memory_space<vmem>>, vector<1x8x128xf32>,
    return
  }
  func.func @transform_0(%arg0: i32) -> (i32, i32) {
    %c0_i32 = arith.constant 0 : i32
    %c0_i32_0 = arith.constant 0 : i32
    return %arg0, %c0_i32 : i32, i32
  }
  func.func @transform_1(%arg0: i32) -> (i32, i32) {
    %c0_i32 = arith.constant 0 : i32
    %c0_i32_0 = arith.constant 0 : i32
    return %arg0, %c0_i32 : i32, i32
  }
  func.func @transform_2(%arg0: i32) -> (i32, i32, i32) {
    %c0_i32 = arith.constant 0 : i32
    %c0_i32_0 = arith.constant 0 : i32
    %c0_i32_1 = arith.constant 0 : i32
    return %arg0, %c0_i32, %c0_i32_0 : i32, i32, i32
  }
}

</mosaic_0001>

<llo_original>
// kernel: tpu_custom_call.1
$region0: #{tpu_custom_call.1}
  #allocation0 [shape = 'u32[]', space=smem, size = 0x4, offset = 0x4, fixed_abs, tag = 'smem constant byte address 0x4 - core index']
  #allocation1 [shape = 'u32[144,128]{1,0:T(1,128)}', space=vmem, size = 0x12000, scoped, tag = 'internal scratch']
  %s0 = inlined_call_operand.hbm [shape: f32[16,128], index: 0, kind: input, shape index: {}]
  %s1 = inlined_call_operand.hbm [shape: f32[16,128], index: 1, kind: input, shape index: {}]
  %s2 = inlined_call_operand.hbm [shape: f32[1,8,128], index: 2, kind: output, shape index: {}]
  %s3 = sld [smem:[#allocation0]]
  $region26: #{tpu_custom_call.1} parent=0
    _
  %s5 = ssub.s32 1, %s3
  %s6 = scalar_select 0, %s5, %s3
  $region1: #{tpu_custom_call.1} parent=0
    #allocation2 [shape = 'u8[8192]{0}', space=vmem, size = 0x2000, scoped, tag = 'input window, operand 0, single buffered']
    #allocation3 [shape = 's32[1]{0}', space=sflag, size = 0x4, scoped, tag = 'scoped memory for tpu_custom_call.1']
    #allocation4 [shape = 's32[1]{0}', space=sflag, size = 0x4, scoped, tag = 'scoped memory for tpu_custom_call.1']
    #allocation5 [shape = 'u8[8192]{0}', space=vmem, size = 0x2000, scoped, tag = 'input window, operand 1, single buffered']
    #allocation6 [shape = 's32[1]{0}', space=sflag, size = 0x4, scoped, tag = 'scoped memory for tpu_custom_call.1']
    #allocation7 [shape = 'u8[4096]{0}', space=vmem, size = 0x1000, scoped, tag = 'output window, operand 0, single buffered']
    %7 = vsyncpa [#allocation3], 0
    %8 = vsyncpa [#allocation6], 0
    %9 = vsyncpa [#allocation4], 0
    // Predicated region
    $region2: #{tpu_custom_call.1} parent=1 // pred_check
      _
    $region3: #{tpu_custom_call.1} parent=1 // pred_check_branch
      %11 = sbr.rel (0) target = $region5
    $region4: #{tpu_custom_call.1} parent=1 // pred_region
      %s13 = ssub.s32 256, 256
      %14 = vsyncadd [#allocation3], %s13
      %s15 = sshll.u32 [#allocation2], 4
      %s16 = int_to_ptr.vmem [resolvable:$true] %s15
      %21 = dma.hbm_to_vmem [thread:$0]  %s0, 256, %s16, [#allocation3], 128, 128, 8
    $region5: #{tpu_custom_call.1} parent=1 // pred_fallthru
      _
    // Predicated region
    $region6: #{tpu_custom_call.1} parent=1 // pred_check
      _
    $region7: #{tpu_custom_call.1} parent=1 // pred_check_branch
      %23 = sbr.rel (0) target = $region9
    $region8: #{tpu_custom_call.1} parent=1 // pred_region
      %s25 = ssub.s32 256, 256
      %26 = vsyncadd [#allocation6], %s25
      %s27 = sshll.u32 [#allocation5], 4
      %s28 = int_to_ptr.vmem [resolvable:$true] %s27
      %33 = dma.hbm_to_vmem [thread:$0]  %s1, 256, %s28, [#allocation6], 128, 128, 8
    $region9: #{tpu_custom_call.1} parent=1 // pred_fallthru
      _
    // Predicated region
    $region10: #{tpu_custom_call.1} parent=1 // pred_check
      _
    $region11: #{tpu_custom_call.1} parent=1 // pred_check_branch
      %35 = sbr.rel (0) target = $region13
    $region12: #{tpu_custom_call.1} parent=1 // pred_region
      %36 = dma.done [#allocation3], 256
    $region13: #{tpu_custom_call.1} parent=1 // pred_fallthru
      _
    // Predicated region
    $region14: #{tpu_custom_call.1} parent=1 // pred_check
      _
    $region15: #{tpu_custom_call.1} parent=1 // pred_check_branch
      %38 = sbr.rel (0) target = $region17
    $region16: #{tpu_custom_call.1} parent=1 // pred_region
      %39 = dma.done [#allocation6], 256
    $region17: #{tpu_custom_call.1} parent=1 // pred_fallthru
      _
    %v40 = vld [vmem:[#allocation2] sm:$0xff]
    %v41 = vld [vmem:[#allocation2 + $0x8] sm:$0xff]
    %v42 = vld [vmem:[#allocation5] sm:$0xff]
    %v43 = vld [vmem:[#allocation5 + $0x8] sm:$0xff]
    %vm44 = vcmp.ne.f32.partialorder %v42, 1.0
    %vm45 = vcmp.ne.f32.partialorder %v43, 1.0
    %v46 = vsub.f32 %v40, %v42
    %v47 = vsub.f32 %v41, %v43
    %v48 = vand.u32 2147483647, %v46
    %v49 = vand.u32 2147483647, %v47
    %v50 = vsel %vm44, %v48, -inf
    %v51 = vsel %vm45, %v49, -inf
    %v52 = vmax.f32 %v50, %v51
    %53 = vst [vmem:[#allocation7] sm:$0xff] %v52
    // Predicated region
    $region18: #{tpu_custom_call.1} parent=1 // pred_check
      _
    $region19: #{tpu_custom_call.1} parent=1 // pred_check_branch
      %55 = sbr.rel (0) target = $region21
    $region20: #{tpu_custom_call.1} parent=1 // pred_region
      %s57 = ssub.s32 128, 128
      %58 = vsyncadd [#allocation4], %s57
      %s60 = sshll.u32 [#allocation7], 4
      %s61 = int_to_ptr.vmem [resolvable:$true] %s60
      %63 = dma.vmem_to_hbm [thread:$0]  %s61, 128, %s2, [#allocation4]
    $region21: #{tpu_custom_call.1} parent=1 // pred_fallthru
      _
    // Predicated region
    $region22: #{tpu_custom_call.1} parent=1 // pred_check
      _
    $region23: #{tpu_custom_call.1} parent=1 // pred_check_branch
      %65 = sbr.rel (0) target = $region25
    $region24: #{tpu_custom_call.1} parent=1 // pred_region
      %66 = dma.done [#allocation4], 128
    $region25: #{tpu_custom_call.1} parent=1 // pred_fallthru
      _
    %67 = vsyncpa [#allocation3], 1
    %68 = vsyncpa [#allocation6], 1
    %69 = vsyncpa [#allocation4], 1

</llo_original>
